<compile_context>
chip_gen: v7x
topology: tpu7x:2x2x1
jax: 0.10.0
libtpu: 0.0.40
codegen_flags: <defaults>
</compile_context>

<pallas_src>
import math

import jax
import jax.numpy as jnp
from jax.experimental import pallas as pl
from jax.experimental.pallas import tpu as pltpu


def transition_kernel(x_ref, scale_ref, shift_ref, w_ref, o_ref):
    # x_ref:     [1, TPh, 2, Wo, 2*Cin]  bf16 (axis 2 = vertical pool pair,
    #                                          lane axis 2*Cin = horizontal pool pair)
    # scale_ref: [1, 2*Cin] f32   folded BN scale, duplicated for the column pair
    # shift_ref: [1, 2*Cin] f32   folded BN shift, duplicated for the column pair
    # w_ref:     [2*Cin, Cout] bf16 = 0.25 * [w; w]  (conv + horizontal pool + 1/4)
    # o_ref:     [1, TPh*Wo, Cout] f32
    x = x_ref[0]                               # [TPh, 2, Wo, 2*Cin] bf16
    scale = scale_ref[0]                       # [2*Cin] f32
    shift = shift_ref[0]                       # [2*Cin] f32

    # Folded BN + ReLU in f32 on the VPU (v5e has no bf16 VALU), with the vertical half of the
    # 2x2 average pool fused in so no [TPh, 2, Wo, 2*Cin] f32 intermediate is materialized.
    hp = (jnp.maximum(x[:, 0].astype(jnp.float32) * scale + shift, 0.0)
          + jnp.maximum(x[:, 1].astype(jnp.float32) * scale + shift, 0.0))  # [TPh, Wo, 2*Cin]

    tph, wo, c2 = hp.shape
    # 1x1 conv + horizontal pool + 0.25 scaling in one MXU matmul (bf16 in, f32 accumulate).
    # NOTE: the (TPh, Wo) -> (TPh*Wo) merge is metadata-only when Wo % 8 == 0 (true here); for
    # Wo % 8 != 0 it is an in-VMEM relayout — acceptable, but padding Wo in the block would
    # remove it for DenseNet's Wo = 28/14/7 cases.
    lhs = hp.reshape(tph * wo, c2).astype(jnp.bfloat16)
    y = jnp.dot(lhs, w_ref[...], preferred_element_type=jnp.float32)        # [TPh*Wo, Cout]
    o_ref[0] = y.astype(o_ref.dtype)


def _pick_row_tile(ho, wo, cin, cout, n_batch, total_budget_bytes=12 * 1024 * 1024):
    """Pick the output-row tile TPh against a VMEM budget that covers double-buffered
    input/output blocks, the (double-buffered) grid-invariant operands and the in-kernel
    f32 intermediates. Ragged last tile is allowed (pl.cdiv grid)."""
    in_it, out_it, acc_it = 2, 4, 4                       # bf16 in, f32 out / accum
    # Grid-invariant operands (weight + scale/shift), double-buffered by the pipeliner.
    const_bytes = 2 * (2 * cin * cout * in_it) + 4 * (2 * cin * 4)
    avail = max(total_budget_bytes - const_bytes, 1 << 20)

    in_row = 2 * wo * 2 * cin * in_it                     # one TPh-row of the input block
    out_row = wo * cout * out_it                          # one TPh-row of the output block
    interm_row = wo * 2 * cin * (acc_it + in_it) + wo * cout * acc_it   # hp, bf16 lhs, dot out
    per_row = 2 * in_row + 2 * out_row + interm_row       # double-buffered in/out + intermediates

    tph = max(1, min(ho, int(avail // max(per_row, 1))))

    # Keep at least ~4 grid steps so both v7x TensorCores stay busy under megacore sharding.
    min_row_tiles = max(1, pl.cdiv(4, max(n_batch, 1)))
    tph = min(tph, max(1, pl.cdiv(ho, min_row_tiles)))

    # Flattened output block (TPh*Wo, Cout): the sublane dim must be a multiple of 8 unless the
    # block spans the whole Ho*Wo axis.
    if tph < ho:
        req = 8 // math.gcd(wo, 8)
        tph = min(ho, max(req, (tph // req) * req))
    return tph


def transition_block_nhwc(x_nhwc, gamma, beta, w_oi11, eps=1e-5):
    """Forward of TransitionBlock (training-mode BN) on NHWC input, NHWC output.
    Use this entry point directly when the surrounding model is NHWC (no boundary transposes)."""
    N, H, W, Cin = x_nhwc.shape
    Cout = w_oi11.shape[0]
    assert H % 2 == 0 and W % 2 == 0, "AvgPool2d(2,2) expects even spatial dims"
    Ho, Wo = H // 2, W // 2

    # --- BN batch statistics (f32) folded to scale/shift; computed on the NHWC tensor so XLA
    # --- fuses the reduction with any upstream transpose (x read once).
    xf = x_nhwc.astype(jnp.float32)
    mean = jnp.mean(xf, axis=(0, 1, 2))
    var = jnp.var(xf, axis=(0, 1, 2))          # biased variance, as BN uses for normalization
    inv = gamma.astype(jnp.float32) / jnp.sqrt(var + eps)
    scale = inv
    shift = beta.astype(jnp.float32) - mean * inv
    # Duplicate for the (left, right) column pair folded into the lane axis.
    scale2 = jnp.concatenate([scale, scale]).reshape(1, 2 * Cin).astype(jnp.float32)
    shift2 = jnp.concatenate([shift, shift]).reshape(1, 2 * Cin).astype(jnp.float32)

    # --- conv weight [Cout, Cin, 1, 1] -> bf16 [2*Cin, Cout] with the horizontal pool sum and
    # --- the 0.25 average factor folded in.
    w_mat = jnp.transpose(w_oi11[:, :, 0, 0], (1, 0)).astype(jnp.float32)   # [Cin, Cout]
    w2 = (0.25 * jnp.concatenate([w_mat, w_mat], axis=0)).astype(jnp.bfloat16)  # [2*Cin, Cout]

    # --- bf16 activations, free contiguous reshape exposing the 2x2 pool structure.
    x5 = x_nhwc.astype(jnp.bfloat16).reshape(N, Ho, 2, Wo, 2 * Cin)

    tph = _pick_row_tile(Ho, Wo, Cin, Cout, N)
    grid = (N, pl.cdiv(Ho, tph))

    flops = 2 * N * Ho * Wo * (2 * Cin) * Cout + 6 * N * H * W * Cin
    bytes_accessed = (x5.size * 2 + w2.size * 2 + (scale2.size + shift2.size) * 4
                      + N * Ho * Wo * Cout * 4)

    out_flat = pl.pallas_call(
        transition_kernel,
        out_shape=jax.ShapeDtypeStruct((N, Ho * Wo, Cout), jnp.float32),
        grid_spec=pltpu.PrefetchScalarGridSpec(
            num_scalar_prefetch=0,
            grid=grid,
            in_specs=[
                pl.BlockSpec((1, tph, 2, Wo, 2 * Cin), lambda n, r: (n, r, 0, 0, 0)),
                # w2/scale2/shift2 are grid-invariant; their (default double-buffered) footprint
                # is small in bf16/f32 and is accounted for in _pick_row_tile's budget.
                pl.BlockSpec((1, 2 * Cin), lambda n, r: (0, 0)),
                pl.BlockSpec((1, 2 * Cin), lambda n, r: (0, 0)),
                pl.BlockSpec((2 * Cin, Cout), lambda n, r: (0, 0)),
            ],
            out_specs=pl.BlockSpec((1, tph * Wo, Cout), lambda n, r: (n, r, 0)),
        ),
        compiler_params=pltpu.CompilerParams(
            dimension_semantics=("parallel", "parallel"),
            vmem_limit_bytes=32 * 1024 * 1024,
        ),
        cost_estimate=pl.CostEstimate(
            flops=flops, transcendentals=0, bytes_accessed=bytes_accessed),
    )(x5, scale2, shift2, w2)

    return out_flat.reshape(N, Ho, Wo, Cout)            # free un-flatten at the boundary


def transition_block(x_nchw, gamma, beta, w_oi11, eps=1e-5):
    """Module-faithful NCHW interface. The two boundary transposes disappear if the caller
    uses transition_block_nhwc directly in an NHWC model."""
    x_nhwc = jnp.transpose(x_nchw, (0, 2, 3, 1))        # [N, H, W, Cin]
    out_nhwc = transition_block_nhwc(x_nhwc, gamma, beta, w_oi11, eps=eps)
    return jnp.transpose(out_nhwc, (0, 3, 1, 2))        # [N, Cout, Ho, Wo]


def ref_forward(x_nchw, gamma, beta, w_oi11, eps=1e-5):
    """Pure-JAX f32 reference matching PyTorch TransitionBlock (training-mode BN)."""
    mean = x_nchw.mean(axis=(0, 2, 3), keepdims=True)
    var = x_nchw.var(axis=(0, 2, 3), keepdims=True)
    h = (x_nchw - mean) / jnp.sqrt(var + eps)
    h = h * gamma.reshape(1, -1, 1, 1) + beta.reshape(1, -1, 1, 1)
    h = jnp.maximum(h, 0.0)
    y = jnp.einsum("nchw,oc->nohw", h, w_oi11[:, :, 0, 0])
    N, C, H, W = y.shape
    return y.reshape(N, C, H // 2, 2, W // 2, 2).mean(axis=(3, 5))


if __name__ == "__main__":
    key = jax.random.PRNGKey(0)
    k1, k2, k3, k4 = jax.random.split(key, 4)

    N, Cin, H, W = 2, 4, 16, 16
    Cout = 8

    x = jax.random.normal(k1, (N, Cin, H, W), dtype=jnp.float32)
    gamma = 1.0 + 0.1 * jax.random.normal(k2, (Cin,), dtype=jnp.float32)
    beta = 0.1 * jax.random.normal(k3, (Cin,), dtype=jnp.float32)
    w = 0.2 * jax.random.normal(k4, (Cout, Cin, 1, 1), dtype=jnp.float32)

    out = jax.block_until_ready(transition_block(x, gamma, beta, w))
    ref = ref_forward(x, gamma, beta, w)

    assert out.shape == (N, Cout, H // 2, W // 2), out.shape
    err = float(jnp.max(jnp.abs(out - ref)))
    # Tolerance loosened vs. the f32 reference because the kernel streams bf16 activations/weight
    # (per the performance review); f32 MXU accumulation keeps the error well within this bound.
    assert err < 5e-2, f"max abs err {err}"

    print("KERNEL_OK")
</pallas_src>

<mosaic_0001>
module attributes {stable_mosaic.version = 11 : i64} {
  func.func @transition_kernel(%arg0: i32, %arg1: i32, %arg2: memref<1x4x2x8x8xbf16, #tpu.memory_space<vmem>>, %arg3: memref<1x8xf32, #tpu.memory_space<vmem>>, %arg4: memref<1x8xf32, #tpu.memory_space<vmem>>, %arg5: memref<8x8xbf16, #tpu.memory_space<vmem>>, %arg6: memref<1x32x8xf32, #tpu.memory_space<vmem>>) attributes {dimension_semantics = [#tpu.dimension_semantics<parallel>, #tpu.dimension_semantics<parallel>], iteration_bounds = array<i64: 2, 2>, scalar_prefetch = 0 : i64, scratch_operands = 0 : i64, tpu.core_type = #tpu.core_type<tc>, window_params = [{transform_indices = @transform_0, window_bounds = array<i64: 1, 4, 2, 8, 8>}, {pipeline_mode = #tpu.pipeline_mode<synchronous>, transform_indices = @transform_1, window_bounds = array<i64: 1, 8>}, {pipeline_mode = #tpu.pipeline_mode<synchronous>, transform_indices = @transform_2, window_bounds = array<i64: 1, 8>}, {pipeline_mode = #tpu.pipeline_mode<synchronous>, transform_indices = @transform_3, window_bounds = array<i64: 8, 8>}, {transform_indices = @transform_4, window_bounds = array<i64: 1, 32, 8>}]} {
    %c0 = arith.constant 0 : index
    %c0_0 = arith.constant 0 : index
    %c0_1 = arith.constant 0 : index
    %c0_2 = arith.constant 0 : index
    %c0_3 = arith.constant 0 : index
    %0 = vector.load %arg2[%c0, %c0_0, %c0_1, %c0_2, %c0_3] : memref<1x4x2x8x8xbf16, #tpu.memory_space<vmem>>, vector<1x4x2x8x8xbf16>
    %1 = vector.shape_cast %0 : vector<1x4x2x8x8xbf16> to vector<4x2x8x8xbf16>
    %c0_4 = arith.constant 0 : index
    %c0_5 = arith.constant 0 : index
    %2 = vector.load %arg3[%c0_4, %c0_5] : memref<1x8xf32, #tpu.memory_space<vmem>>, vector<1x8xf32>
    %3 = vector.shape_cast %2 : vector<1x8xf32> to vector<8xf32>
    %c0_6 = arith.constant 0 : index
    %c0_7 = arith.constant 0 : index
    %4 = vector.load %arg4[%c0_6, %c0_7] : memref<1x8xf32, #tpu.memory_space<vmem>>, vector<1x8xf32>
    %5 = vector.shape_cast %4 : vector<1x8xf32> to vector<8xf32>
    %6 = vector.extract_strided_slice %1 {offsets = [0, 0, 0, 0], sizes = [4, 1, 8, 8], strides = [1, 1, 1, 1]} : vector<4x2x8x8xbf16> to vector<4x1x8x8xbf16>
    %7 = vector.shape_cast %6 : vector<4x1x8x8xbf16> to vector<4x8x8xbf16>
    %8 = arith.extf %7 : vector<4x8x8xbf16> to vector<4x8x8xf32>
    %9 = vector.shape_cast %3 : vector<8xf32> to vector<1x1x8xf32>
    %10 = vector.broadcast %9 : vector<1x1x8xf32> to vector<4x8x8xf32>
    %11 = arith.mulf %8, %10 : vector<4x8x8xf32>
    %12 = vector.shape_cast %5 : vector<8xf32> to vector<1x1x8xf32>
    %13 = vector.broadcast %12 : vector<1x1x8xf32> to vector<4x8x8xf32>
    %14 = arith.addf %11, %13 : vector<4x8x8xf32>
    %cst = arith.constant 0.000000e+00 : f32
    %15 = vector.broadcast %cst : f32 to vector<4x8x8xf32>
    %16 = arith.maximumf %14, %15 : vector<4x8x8xf32>
    %17 = vector.extract_strided_slice %1 {offsets = [0, 1, 0, 0], sizes = [4, 1, 8, 8], strides = [1, 1, 1, 1]} : vector<4x2x8x8xbf16> to vector<4x1x8x8xbf16>
    %18 = vector.shape_cast %17 : vector<4x1x8x8xbf16> to vector<4x8x8xbf16>
    %19 = arith.extf %18 : vector<4x8x8xbf16> to vector<4x8x8xf32>
    %20 = vector.shape_cast %3 : vector<8xf32> to vector<1x1x8xf32>
    %21 = vector.broadcast %20 : vector<1x1x8xf32> to vector<4x8x8xf32>
    %22 = arith.mulf %19, %21 : vector<4x8x8xf32>
    %23 = vector.shape_cast %5 : vector<8xf32> to vector<1x1x8xf32>
    %24 = vector.broadcast %23 : vector<1x1x8xf32> to vector<4x8x8xf32>
    %25 = arith.addf %22, %24 : vector<4x8x8xf32>
    %cst_8 = arith.constant 0.000000e+00 : f32
    %26 = vector.broadcast %cst_8 : f32 to vector<4x8x8xf32>
    %27 = arith.maximumf %25, %26 : vector<4x8x8xf32>
    %28 = arith.addf %16, %27 : vector<4x8x8xf32>
    %29 = vector.shape_cast %28 : vector<4x8x8xf32> to vector<32x8xf32>
    %30 = arith.truncf %29 : vector<32x8xf32> to vector<32x8xbf16>
    %c0_9 = arith.constant 0 : index
    %c0_10 = arith.constant 0 : index
    %31 = vector.load %arg5[%c0_9, %c0_10] : memref<8x8xbf16, #tpu.memory_space<vmem>>, vector<8x8xbf16>
    %cst_11 = arith.constant dense<0.000000e+00> : vector<32x8xf32>
    %32 = tpu.matmul %30, %31, %cst_11 {dimension_numbers = #tpu.dot_dimension_numbers<[1], [0], [0], [1], [0, 0, 1, 1], [], []>} : vector<32x8xbf16>, vector<8x8xbf16>, vector<32x8xf32> -> vector<32x8xf32>
    %c0_12 = arith.constant 0 : index
    %c0_13 = arith.constant 0 : index
    %c0_14 = arith.constant 0 : index
    %33 = vector.load %arg6[%c0_12, %c0_13, %c0_14] : memref<1x32x8xf32, #tpu.memory_space<vmem>>, vector<1x32x8xf32>
    %34 = vector.shape_cast %33 : vector<1x32x8xf32> to vector<32x8xf32>
    %35 = vector.shape_cast %32 : vector<32x8xf32> to vector<1x32x8xf32>
    tpu.vector_store %arg6[%c0_12, %c0_13, %c0_14], %35 {strides = array<i32>} : memref<1x32x8xf32, #tpu.memory_space<vmem>>, vector<1x32x8xf32>,
    return
  }
  func.func @transform_0(%arg0: i32, %arg1: i32) -> (i32, i32, i32, i32, i32) {
    %c0_i32 = arith.constant 0 : i32
    %c0_i32_0 = arith.constant 0 : i32
    %c0_i32_1 = arith.constant 0 : i32
    %c0_i32_2 = arith.constant 0 : i32
    return %arg0, %arg1, %c0_i32, %c0_i32_0, %c0_i32_1 : i32, i32, i32, i32, i32
  }
  func.func @transform_1(%arg0: i32, %arg1: i32) -> (i32, i32) {
    %c0_i32 = arith.constant 0 : i32
    %c0_i32_0 = arith.constant 0 : i32
    %c0_i32_1 = arith.constant 0 : i32
    return %c0_i32, %c0_i32_0 : i32, i32
  }
  func.func @transform_2(%arg0: i32, %arg1: i32) -> (i32, i32) {
    %c0_i32 = arith.constant 0 : i32
    %c0_i32_0 = arith.constant 0 : i32
    %c0_i32_1 = arith.constant 0 : i32
    return %c0_i32, %c0_i32_0 : i32, i32
  }
  func.func @transform_3(%arg0: i32, %arg1: i32) -> (i32, i32) {
    %c0_i32 = arith.constant 0 : i32
    %c0_i32_0 = arith.constant 0 : i32
    %c0_i32_1 = arith.constant 0 : i32
    return %c0_i32, %c0_i32_0 : i32, i32
  }
  func.func @transform_4(%arg0: i32, %arg1: i32) -> (i32, i32, i32) {
    %c0_i32 = arith.constant 0 : i32
    %c0_i32_0 = arith.constant 0 : i32
    return %arg0, %arg1, %c0_i32 : i32, i32, i32
  }
}

</mosaic_0001>

<llo_original>
// kernel: tpu_custom_call.1
$region0: #{tpu_custom_call.1}
  #allocation0 [shape = 'u32[]', space=smem, size = 0x4, offset = 0x4, fixed_abs, tag = 'smem constant byte address 0x4 - core index']
  #allocation1 [shape = 'u32[144,128]{1,0:T(1,128)}', space=vmem, size = 0x12000, scoped, tag = 'internal scratch']
  %s0 = inlined_call_operand.hbm [shape: bf16[2,8,2,8,8], index: 0, kind: input, shape index: {}]
  %s1 = inlined_call_operand.vmem [shape: f32[1,8], index: 1, kind: input, shape index: {}]
  %s2 = inlined_call_operand.vmem [shape: f32[1,8], index: 2, kind: input, shape index: {}]
  %s3 = inlined_call_operand.vmem [shape: bf16[8,8], index: 3, kind: input, shape index: {}]
  %s4 = inlined_call_operand.vmem [shape: f32[2,64,8], index: 4, kind: output, shape index: {}]
  %s5 = sld [smem:[#allocation0]]
  $region53: #{tpu_custom_call.1} parent=0
    _
  %s7 = ssub.s32 1, %s5
  %s8 = scalar_select 0, %s7, %s5
  $region1: #{tpu_custom_call.1} parent=0
    #allocation2 [shape = 'u8[32768]{0}', space=vmem, size = 0x8000, scoped, tag = 'input window, operand 0']
    #allocation3 [shape = 's32[2]{0}', space=sflag, size = 0x8, scoped, tag = 'scoped memory for tpu_custom_call.1']
    %9 = vsyncpa [#allocation3], 0
    %s10 = scalar_lea.sflag [#allocation3], 1
    %11 = vsyncpa %s10, 0
    loop: start=0, step=1, limit=6
    $region2: #{tpu_custom_call.1} parent=1 // loop_pre_header
      _
    $region3: #{tpu_custom_call.1} parent=1 // loop_header
      %s13 = sphi 0, %s17
      %p14 = scmp.ge.s32.totalorder %s13, 6
      %s20 = sphi 0, %s32
      %s21 = sphi 0, %s28
      %s22 = sphi 0, %s20
      %s23 = sphi 0, %s21
      %s24 = sphi 0, %s22
      %s25 = sphi 0, %s23
      %s37 = sphi 0, %s39
      %s40 = sphi 0, %s37
      %s41 = sphi 0, %s40
      %s57 = sphi 0, %s41
      %s61 = sphi 0, %s61
      %s63 = sphi 0, %s61
      %s64 = sphi 0, %s63
      %s78 = sphi 0, %s64
      %s82 = sphi 0, %s82
      %s84 = sphi 0, %s82
      %s85 = sphi 0, %s84
      %s99 = sphi 0, %s85
      %s103 = sphi 0, %s103
      %s105 = sphi 0, %s103
      %s106 = sphi 0, %s105
      %s120 = sphi 0, %s106
      %s128 = sphi 0, %s130
      %s131 = sphi 0, %s128
      %s132 = sphi 0, %s131
      %s148 = sphi 0, %s132
    $region4: #{tpu_custom_call.1} parent=1 // loop_header_branch
      %16 = sbr.rel (%p14) target = $region8
    $region5: #{tpu_custom_call.1} parent=1 // loop_body
      %s18 = ssub.s32 %s13, 1
      %s19 = ssub.s32 %s13, 2
      %s26 = sadd.s32 1, %s21
      %p27 = scmp.ge.s32.totalorder %s26, 2
      %s28 = scalar_select %p27, 0, %s26
      %s29 = sadd.s32 1, %s20
      %s30 = scalar_select %p27, %s29, %s20
      %p31 = scmp.ge.s32.totalorder %s30, 2
      %s32 = scalar_select %p31, 0, %s30
      %s33 = ssub.s32 %s20, %s32
      %s34 = ssub.s32 %s21, %s28
      %s35 = sor.u32 %s33, %s34
      %p36 = scmp.eq.s32.totalorder %s35, 0
      %s38 = sadd.s32 %s37, 1
      %s39 = scalar_select %p36, %s37, %s38
      %p42 = pneg %p36
      %p43 = scmp.eq.s32.totalorder %s13, 3
      %p44 = por %p42, %p43
      %p45 = scmp.ne.s32.totalorder %s37, %s40
      %p46 = scmp.eq.s32.totalorder %s13, 0
      %p47 = por %p45, %p46
      %p48 = scmp.ne.s32.totalorder %s37, %s40
      %p49 = scmp.eq.s32.totalorder %s18, 3
      %p50 = por %p48, %p49
      %p51 = scmp.ne.s32.totalorder %s40, %s41
      %p52 = scmp.eq.s32.totalorder %s18, 0
      %p53 = por %p51, %p52
      %p54 = scmp.ne.s32.totalorder %s40, %s41
      %p55 = scmp.eq.s32.totalorder %s19, 3
      %p56 = por %p54, %p55
      %p58 = scmp.ne.s32.totalorder %s41, %s57
      %p59 = scmp.eq.s32.totalorder %s19, 0
      %p60 = por %p58, %p59
      %s62 = sadd.s32 %s61, 1
      %p65 = scmp.eq.s32.totalorder %s13, 3
      %p66 = scmp.ne.s32.totalorder %s61, %s63
      %p67 = scmp.eq.s32.totalorder %s13, 0
      %p68 = por %p66, %p67
      %p69 = scmp.ne.s32.totalorder %s61, %s63
      %p70 = scmp.eq.s32.totalorder %s18, 3
      %p71 = por %p69, %p70
      %p72 = scmp.ne.s32.totalorder %s63, %s64
      %p73 = scmp.eq.s32.totalorder %s18, 0
      %p74 = por %p72, %p73
      %p75 = scmp.ne.s32.totalorder %s63, %s64
      %p76 = scmp.eq.s32.totalorder %s19, 3
      %p77 = por %p75, %p76
      %p79 = scmp.ne.s32.totalorder %s64, %s78
      %p80 = scmp.eq.s32.totalorder %s19, 0
      %p81 = por %p79, %p80
      %s83 = sadd.s32 %s82, 1
      %p86 = scmp.eq.s32.totalorder %s13, 3
      %p87 = scmp.ne.s32.totalorder %s82, %s84
      %p88 = scmp.eq.s32.totalorder %s13, 0
      %p89 = por %p87, %p88
      %p90 = scmp.ne.s32.totalorder %s82, %s84
      %p91 = scmp.eq.s32.totalorder %s18, 3
      %p92 = por %p90, %p91
      %p93 = scmp.ne.s32.totalorder %s84, %s85
      %p94 = scmp.eq.s32.totalorder %s18, 0
      %p95 = por %p93, %p94
      %p96 = scmp.ne.s32.totalorder %s84, %s85
      %p97 = scmp.eq.s32.totalorder %s19, 3
      %p98 = por %p96, %p97
      %p100 = scmp.ne.s32.totalorder %s85, %s99
      %p101 = scmp.eq.s32.totalorder %s19, 0
      %p102 = por %p100, %p101
      %s104 = sadd.s32 %s103, 1
      %p107 = scmp.eq.s32.totalorder %s13, 3
      %p108 = scmp.ne.s32.totalorder %s103, %s105
      %p109 = scmp.eq.s32.totalorder %s13, 0
      %p110 = por %p108, %p109
      %p111 = scmp.ne.s32.totalorder %s103, %s105
      %p112 = scmp.eq.s32.totalorder %s18, 3
      %p113 = por %p111, %p112
      %p114 = scmp.ne.s32.totalorder %s105, %s106
      %p115 = scmp.eq.s32.totalorder %s18, 0
      %p116 = por %p114, %p115
      %p117 = scmp.ne.s32.totalorder %s105, %s106
      %p118 = scmp.eq.s32.totalorder %s19, 3
      %p119 = por %p117, %p118
      %p121 = scmp.ne.s32.totalorder %s106, %s120
      %p122 = scmp.eq.s32.totalorder %s19, 0
      %p123 = por %p121, %p122
      %s124 = ssub.s32 %s20, %s32
      %s125 = ssub.s32 %s21, %s28
      %s126 = sor.u32 %s124, %s125
      %p127 = scmp.eq.s32.totalorder %s126, 0
      %s129 = sadd.s32 %s128, 1
      %s130 = scalar_select %p127, %s128, %s129
      %p133 = pneg %p127
      %p134 = scmp.eq.s32.totalorder %s13, 3
      %p135 = por %p133, %p134
      %p136 = scmp.ne.s32.totalorder %s128, %s131
      %p137 = scmp.eq.s32.totalorder %s13, 0
      %p138 = por %p136, %p137
      %p139 = scmp.ne.s32.totalorder %s128, %s131
      %p140 = scmp.eq.s32.totalorder %s18, 3
      %p141 = por %p139, %p140
      %p142 = scmp.ne.s32.totalorder %s131, %s132
      %p143 = scmp.eq.s32.totalorder %s18, 0
      %p144 = por %p142, %p143
      %p145 = scmp.ne.s32.totalorder %s131, %s132
      %p146 = scmp.eq.s32.totalorder %s19, 3
      %p147 = por %p145, %p146
      %p149 = scmp.ne.s32.totalorder %s132, %s148
      %p150 = scmp.eq.s32.totalorder %s19, 0
      %p151 = por %p149, %p150
      %p152 = scmp.le.s32.totalorder 1, %s13
      %p153 = scmp.lt.s32.totalorder %s13, 5
      %p154 = pnand %p152, %p153
      %p155 = pneg %p154
      // Predicated region
      $region9: #{tpu_custom_call.1} parent=5 // pred_check
        _
      $region10: #{tpu_custom_call.1} parent=5 // pred_check_branch
        %157 = sbr.rel (%p154) target = $region12
      $region11: #{tpu_custom_call.1} parent=5 // pred_region
        %s158 = ssub.s32 %s13, 1
        // Predicated region
        $region13: #{tpu_custom_call.1} parent=11 // pred_check
          %p159 = pneg %p74
        $region14: #{tpu_custom_call.1} parent=11 // pred_check_branch
          %161 = sbr.rel (%p159) target = $region16
        $region15: #{tpu_custom_call.1} parent=11 // pred_region
          _
        $region16: #{tpu_custom_call.1} parent=11 // pred_fallthru
          _
        // Predicated region
        $region17: #{tpu_custom_call.1} parent=11 // pred_check
          %p162 = pneg %p95
        $region18: #{tpu_custom_call.1} parent=11 // pred_check_branch
          %164 = sbr.rel (%p162) target = $region20
        $region19: #{tpu_custom_call.1} parent=11 // pred_region
          _
        $region20: #{tpu_custom_call.1} parent=11 // pred_fallthru
          _
        // Predicated region
        $region21: #{tpu_custom_call.1} parent=11 // pred_check
          %p165 = pneg %p116
        $region22: #{tpu_custom_call.1} parent=11 // pred_check_branch
          %167 = sbr.rel (%p165) target = $region24
        $region23: #{tpu_custom_call.1} parent=11 // pred_region
          _
        $region24: #{tpu_custom_call.1} parent=11 // pred_fallthru
          _
      $region12: #{tpu_custom_call.1} parent=5 // pred_fallthru
        _
      %p168 = scmp.lt.s32.totalorder %s13, 4
      // Predicated region
      $region25: #{tpu_custom_call.1} parent=5 // pred_check
        %p169 = pneg %p168
      $region26: #{tpu_custom_call.1} parent=5 // pred_check_branch
        %171 = sbr.rel (%p169) target = $region28
      $region27: #{tpu_custom_call.1} parent=5 // pred_region
        // Predicated region
        $region29: #{tpu_custom_call.1} parent=27 // pred_check
          %p172 = pneg %p47
        $region30: #{tpu_custom_call.1} parent=27 // pred_check_branch
          %174 = sbr.rel (%p172) target = $region32
        $region31: #{tpu_custom_call.1} parent=27 // pred_region
          %s175 = sand.u32 %s37, 1
          %s176 = scalar_lea.sflag [#allocation3], %s175
          %s177 = sand.u32 %s37, 1
          %s178 = smul.addr %s177, 32
          %s179 = scalar_lea.vmem [#allocation2], %s178
          %s180 = smul.u32 4, %s21
          %s182 = ssub.s32 512, 512
          %183 = vsyncadd %s176, %s182
          %s184 = smul.addr %s180, 2
          %s185 = smul.addr %s20, 16
          %s186 = sadd.s32 %s184, %s185
          %s187 = smul.addr %s186, 64
          %s188 = scalar_lea.hbm %s0, %s187
          %s189 = sshll.u32 %s179, 4
          %s190 = int_to_ptr.vmem [resolvable:$true] %s189
          %195 = dma.hbm_to_vmem [thread:$0]  %s188, 512, %s190, %s176, 64, 64, 4
        $region32: #{tpu_custom_call.1} parent=27 // pred_fallthru
          _
      $region28: #{tpu_custom_call.1} parent=5 // pred_fallthru
        _
      %p196 = scmp.le.s32.totalorder 1, %s13
      %p197 = scmp.lt.s32.totalorder %s13, 5
      %p198 = pnand %p196, %p197
      %p199 = pneg %p198
      // Predicated region
      $region33: #{tpu_custom_call.1} parent=5 // pred_check
        _
      $region34: #{tpu_custom_call.1} parent=5 // pred_check_branch
        %201 = sbr.rel (%p198) target = $region36
      $region35: #{tpu_custom_call.1} parent=5 // pred_region
        %s202 = ssub.s32 %s13, 1
        %s203 = sand.u32 %s40, 1
        %s204 = scalar_lea.sflag [#allocation3], %s203
        %s205 = sand.u32 %s40, 1
        %s206 = smul.addr %s205, 32
        %s207 = scalar_lea.vmem [#allocation2], %s206
        // Predicated region
        $region37: #{tpu_custom_call.1} parent=35 // pred_check
          %p208 = pneg %p53
        $region38: #{tpu_custom_call.1} parent=35 // pred_check_branch
          %210 = sbr.rel (%p208) target = $region40
        $region39: #{tpu_custom_call.1} parent=35 // pred_region
          %211 = dma.done %s204, 512
        $region40: #{tpu_custom_call.1} parent=35 // pred_fallthru
          _
        %s212 = sand.u32 %s40, 1
        %s213 = scalar_lea.sflag [#allocation3], %s212
        %s214 = sand.u32 %s40, 1
        %s215 = smul.addr %s214, 32
        %s216 = scalar_lea.vmem [#allocation2], %s215
        %p217 = pneg %p53
        %p218 = pneg %p50
        %p219 = pneg %p74
        %p220 = pneg %p71
        %p221 = pneg %p95
        %p222 = pneg %p92
        %p223 = pneg %p116
        %p224 = pneg %p113
        %p225 = pneg %p144
        %p226 = pneg %p141
        %s227 = smul.u32 4, %s23
        %p228 = scmp.lt.s32.totalorder %s22, 1
        %s229 = scalar_select %p228, %s22, 1
        %p230 = scmp.lt.s32.totalorder %s227, 7
        %s231 = scalar_select %p230, %s227, 7
        %s232 = smul.addr %s229, 8
        %s233 = sadd.s32 %s231, %s232
        %s234 = smul.addr %s233, 8
        %s235 = scalar_lea.vmem %s4, %s234
        %s236 = smul.u32 4, %s23
        %s237 = smul.u32 4, %s23
        %p238 = scmp.lt.s32.totalorder %s22, 1
        %s239 = scalar_select %p238, %s22, 1
        %p240 = scmp.lt.s32.totalorder %s237, 7
        %s241 = scalar_select %p240, %s237, 7
        %s242 = smul.addr %s239, 8
        %s243 = sadd.s32 %s241, %s242
        %s244 = smul.addr %s243, 8
        %s245 = scalar_lea.vmem %s4, %s244
        %s246 = smul.u32 4, %s23
        %v248 = vld [vmem:[%s207] sm:$0xf]
        %v249 = vld [vmem:[%s207 + $0x4] sm:$0xf]
        %v250 = vld [vmem:[%s207 + $0x8] sm:$0xf]
        %v251 = vld [vmem:[%s207 + $0xc] sm:$0xf]
        %v252 = vld [vmem:[%s207 + $0x10] sm:$0xf]
        %v253 = vld [vmem:[%s207 + $0x14] sm:$0xf]
        %v254 = vld [vmem:[%s207 + $0x18] sm:$0xf]
        %v255 = vld [vmem:[%s207 + $0x1c] sm:$0xf]
        %v256 = vld [vmem:[%s1] sm:$0x1]
        %v257 = vld [vmem:[%s2] sm:$0x1]
        %v258 = vunpack.c.l.bf16 %v248
        %v259 = vunpack.c.l.bf16 %v250
        %v260 = vunpack.c.l.bf16 %v252
        %v261 = vunpack.c.l.bf16 %v254
        %v263 = vlaneseq
        %v264 = vshrl.u32 %v263, 7
        %v265 = vsub.s32 0, %v264
        %v266 = vrot.slane %v256, %v265
        %v268 = vmul.f32 %v258, %v266
        %v269 = vmul.f32 %v259, %v266
        %v270 = vmul.f32 %v260, %v266
        %v271 = vmul.f32 %v261, %v266
        %v273 = vlaneseq
        %v274 = vshrl.u32 %v273, 7
        %v275 = vsub.s32 0, %v274
        %v276 = vrot.slane %v257, %v275
        %v278 = vadd.f32 %v268, %v276
        %v279 = vadd.f32 %v269, %v276
        %v280 = vadd.f32 %v270, %v276
        %v281 = vadd.f32 %v271, %v276
        %v282 = vmax.f32 %v278, 0.0
        %v283 = vmax.f32 %v279, 0.0
        %v284 = vmax.f32 %v280, 0.0
        %v285 = vmax.f32 %v281, 0.0
        %v286 = vunpack.c.l.bf16 %v249
        %v287 = vunpack.c.l.bf16 %v251
        %v288 = vunpack.c.l.bf16 %v253
        %v289 = vunpack.c.l.bf16 %v255
        %v290 = vmul.f32 %v286, %v266
        %v291 = vmul.f32 %v287, %v266
        %v292 = vmul.f32 %v288, %v266
        %v293 = vmul.f32 %v289, %v266
        %v294 = vadd.f32 %v290, %v276
        %v295 = vadd.f32 %v291, %v276
        %v296 = vadd.f32 %v292, %v276
        %v297 = vadd.f32 %v293, %v276
        %v298 = vmax.f32 %v294, 0.0
        %v299 = vmax.f32 %v295, 0.0
        %v300 = vmax.f32 %v296, 0.0
        %v301 = vmax.f32 %v297, 0.0
        %v302 = vadd.f32 %v282, %v298
        %v303 = vadd.f32 %v283, %v299
        %v304 = vadd.f32 %v284, %v300
        %v305 = vadd.f32 %v285, %v301
        %v306 = vpack.c.bf16 %v303, %v302
        %v307 = vpack.c.bf16 %v305, %v304
        %v308 = vld [vmem:[%s3] sm:$0xf]
        %vm309 = vcmask 64512
        %v311 = vsel %vm309, %v306, 0
        %v314 = vsel %vm309, %v307, 0
        %vm316 = vcmask 1043456
        %v318 = vsel %vm316, %v308, 0
        %320 = vmatprep.subr.bf16.mxu0 0
        %321 = vmatpush1.bf16.msra.mxu0 %v318
        %322 = vmatprep.subr.bf16.mxu0 0
        %323 = vmatpush1.bf16.msra.mxu0 0
        %324 = vmatprep.subr.bf16.mxu0 0
        %325 = vmatpush1.bf16.msra.mxu0 0
        %326 = vmatprep.subr.bf16.mxu0 0
        %327 = vmatpush1.bf16.msra.mxu0 0
        %328 = vmatprep.subr.bf16.mxu0 0
        %329 = vmatpush1.bf16.msra.mxu0 0
        %330 = vmatprep.subr.bf16.mxu0 0
        %331 = vmatpush1.bf16.msra.mxu0 0
        %332 = vmatprep.subr.bf16.mxu0 0
        %333 = vmatpush1.bf16.msra.mxu0 0
        %334 = vmatprep.subr.bf16.mxu0 0
        %335 = vmatpush1.bf16.msra.mxu0 0
        %336 = vmatprep.subr.bf16.mxu0 0
        %337 = vmatpush1.bf16.msra.mxu0 0
        %338 = vmatprep.subr.bf16.mxu0 0
        %339 = vmatpush1.bf16.msra.mxu0 0
        %340 = vmatprep.subr.bf16.mxu0 0
        %341 = vmatpush1.bf16.msra.mxu0 0
        %342 = vmatprep.subr.bf16.mxu0 0
        %343 = vmatpush1.bf16.msra.mxu0 0
        %344 = vmatprep.subr.bf16.mxu0 0
        %345 = vmatpush1.bf16.msra.mxu0 0
        %346 = vmatprep.subr.bf16.mxu0 0
        %347 = vmatpush1.bf16.msra.mxu0 0
        %348 = vmatprep.subr.bf16.mxu0 0
        %349 = vmatpush1.bf16.msra.mxu0 0
        %350 = vmatprep.subr.bf16.mxu0 0
        %351 = vmatpush1.bf16.msra.mxu0 0
        %352 = vmatprep.mubr.bf16.mxu0 0
        %353 = vmatmul.mubr.bf16.gmra.mrb[0].mxu0 %v311
        %v354 = vpop.f32.mrb[0].mxu0
        %v355 = vadd.f32 0.0, %v354
        %v356 = vpop.f32.mrb[0].mxu0
        %v357 = vpop.f32.mrb[0].mxu0
        %v358 = vadd.f32 0.0, %v357
        %v359 = vpop.f32.mrb[0].mxu0
        %360 = vmatprep.mubr.bf16.mxu0 0
        %361 = vmatmul.mubr.bf16.gmra.mrb[0].mxu0 %v314
        %v362 = vpop.f32.mrb[0].mxu0
        %v363 = vadd.f32 0.0, %v362
        %v364 = vpop.f32.mrb[0].mxu0
        %v365 = vpop.f32.mrb[0].mxu0
        %v366 = vadd.f32 0.0, %v365
        %v367 = vpop.f32.mrb[0].mxu0
        %368 = vdwg.mxu0
        %369 = vst.msk [vmem:[%s245] sm:$0xff] %vm309, %v355
        %370 = vst.msk [vmem:[%s245 + $0x8] sm:$0xff] %vm309, %v358
        %371 = vst.msk [vmem:[%s245 + $0x10] sm:$0xff] %vm309, %v363
        %372 = vst.msk [vmem:[%s245 + $0x18] sm:$0xff] %vm309, %v366
        %s373 = smul.u32 4, %s23
        %p374 = scmp.lt.s32.totalorder %s22, 1
        %s375 = scalar_select %p374, %s22, 1
        %p376 = scmp.lt.s32.totalorder %s373, 7
        %s377 = scalar_select %p376, %s373, 7
        %s378 = smul.addr %s375, 8
        %s379 = sadd.s32 %s377, %s378
        %s380 = smul.addr %s379, 8
        %s381 = scalar_lea.vmem %s4, %s380
        // Predicated region
        $region41: #{tpu_custom_call.1} parent=35 // pred_check
          %p382 = pneg %p141
        $region42: #{tpu_custom_call.1} parent=35 // pred_check_branch
          %384 = sbr.rel (%p382) target = $region44
        $region43: #{tpu_custom_call.1} parent=35 // pred_region
          %s385 = smul.u32 4, %s23
        $region44: #{tpu_custom_call.1} parent=35 // pred_fallthru
          _
      $region36: #{tpu_custom_call.1} parent=5 // pred_fallthru
        _
      %p386 = scmp.le.s32.totalorder 2, %s13
      // Predicated region
      $region45: #{tpu_custom_call.1} parent=5 // pred_check
        %p387 = pneg %p386
      $region46: #{tpu_custom_call.1} parent=5 // pred_check_branch
        %389 = sbr.rel (%p387) target = $region48
      $region47: #{tpu_custom_call.1} parent=5 // pred_region
        %s390 = ssub.s32 %s13, 2
        // Predicated region
        $region49: #{tpu_custom_call.1} parent=47 // pred_check
          %p391 = pneg %p147
        $region50: #{tpu_custom_call.1} parent=47 // pred_check_branch
          %393 = sbr.rel (%p391) target = $region52
        $region51: #{tpu_custom_call.1} parent=47 // pred_region
          %s394 = smul.u32 4, %s25
          %p395 = scmp.lt.s32.totalorder %s24, 1
          %s396 = scalar_select %p395, %s24, 1
          %p397 = scmp.lt.s32.totalorder %s394, 7
          %s398 = scalar_select %p397, %s394, 7
          %s399 = smul.addr %s396, 8
          %s400 = sadd.s32 %s398, %s399
          %s401 = smul.addr %s400, 8
          %s402 = scalar_lea.vmem %s4, %s401
        $region52: #{tpu_custom_call.1} parent=47 // pred_fallthru
          _
      $region48: #{tpu_custom_call.1} parent=5 // pred_fallthru
        _
    $region6: #{tpu_custom_call.1} parent=1 // loop_footer
      %s17 = sadd.s32 1, %s13
    $region7: #{tpu_custom_call.1} parent=1 // loop_footer_branch
      %12 = sbr.rel target = $region3
    $region8: #{tpu_custom_call.1} parent=1 // loop_exit
      _
    %403 = vsyncpa [#allocation3], 1
    %s404 = scalar_lea.sflag [#allocation3], 1
    %405 = vsyncpa %s404, 1

</llo_original>
